<compile_context>
chip_gen: v5e
topology: v5e:2x2
jax: 0.10.0
libtpu: 0.0.40
codegen_flags: <defaults>
</compile_context>

<pallas_src>
import jax
import jax.numpy as jnp
from jax.experimental import pallas as pl
from jax.experimental.pallas import tpu as pltpu


def gru_encoder_kernel(x_ref, h0_ref, wih_ref, whh_ref, bi_ref, bh_ref,
                       out_ref, hfin_ref):
    """Whole-sequence GRU recurrence in one kernel invocation.

    x_ref   : (S, H)      embedded input sequence (float32)
    h0_ref  : (1, H)      initial hidden state
    wih_ref : (H, GP)     stacked/transposed input weights  [W_ir|W_iz|W_in]^T, zero-padded to GP lanes
    whh_ref : (H, GP)     stacked/transposed hidden weights [W_hr|W_hz|W_hn]^T, zero-padded
    bi_ref  : (1, GP)     input bias  (r|z|n), zero-padded
    bh_ref  : (1, GP)     hidden bias (r|z|n), zero-padded
    out_ref : (S, H)      all hidden states (the GRU output sequence)
    hfin_ref: (1, H)      final hidden state
    """
    S, H = out_ref.shape

    # Hoisted input-side GEMM for all timesteps: (S,H) @ (H,GP) -> (S,GP).
    gi_all = jnp.dot(x_ref[...], wih_ref[...],
                     preferred_element_type=jnp.float32) + bi_ref[...]

    whh = whh_ref[...]
    bh = bh_ref[...]
    h = h0_ref[...]                      # (1, H), carried in registers

    outs = []
    # S is a static Python int -> fully unrolled serial recurrence.
    for t in range(S):
        gh = jnp.dot(h, whh, preferred_element_type=jnp.float32) + bh  # (1, GP)
        gi = gi_all[t:t + 1, :]                                        # (1, GP)
        # PyTorch GRU gate equations (gate order: r, z, n).
        r = jax.nn.sigmoid(gi[:, 0:H] + gh[:, 0:H])
        z = jax.nn.sigmoid(gi[:, H:2 * H] + gh[:, H:2 * H])
        n = jnp.tanh(gi[:, 2 * H:3 * H] + r * gh[:, 2 * H:3 * H])
        h = (1.0 - z) * n + z * h
        outs.append(h)

    out_ref[...] = jnp.concatenate(outs, axis=0)   # single lane-dense store
    hfin_ref[...] = h                              # written once, after the loop


def gru_pallas(x_emb, h0, wih_s, whh_s, bi_s, bh_s):
    """x_emb: (S, H) float32; h0: (1, H); weights pre-stacked/padded."""
    S, H = x_emb.shape
    out, h_fin = pl.pallas_call(
        gru_encoder_kernel,
        out_shape=[
            jax.ShapeDtypeStruct((S, H), jnp.float32),
            jax.ShapeDtypeStruct((1, H), jnp.float32),
        ],
        # No grid: one invocation, all operands resident in VMEM (few KB total).
        in_specs=[pl.BlockSpec(memory_space=pltpu.MemorySpace.VMEM)] * 6,
        out_specs=[pl.BlockSpec(memory_space=pltpu.MemorySpace.VMEM)] * 2,
    )(x_emb, h0, wih_s, whh_s, bi_s, bh_s)
    return out, h_fin


def prepare_gru_params(params):
    """One-time restack: PyTorch (3H,H)/(3H,) GRU weights -> (H, GP) / (1, GP),
    with the fused gate dimension 3H zero-padded up to a multiple of 128 lanes."""
    H = params["w_ih"].shape[1]
    G3 = 3 * H
    GP = ((G3 + 127) // 128) * 128

    def stack_w(w):                       # (3H, H) -> (H, GP), x @ result == x @ W^T
        ws = jnp.asarray(w, jnp.float32).T
        return jnp.pad(ws, ((0, 0), (0, GP - G3)))

    def stack_b(b):                       # (3H,) -> (1, GP)
        return jnp.pad(jnp.asarray(b, jnp.float32).reshape(1, G3),
                       ((0, 0), (0, GP - G3)))

    return {
        "embedding": jnp.asarray(params["embedding"], jnp.float32),
        "semantic_embedding": jnp.asarray(params["semantic_embedding"], jnp.float32),
        "wih_s": stack_w(params["w_ih"]),
        "whh_s": stack_w(params["w_hh"]),
        "b_ih_s": stack_b(params["b_ih"]),
        "b_hh_s": stack_b(params["b_hh"]),
    }


def encoder_rnn_forward(tokens, hidden, prep):
    """Mirror of EncoderRNN.forward.

    tokens : (S, 1) int32 token ids
    hidden : (1, 1, H) initial hidden state
    returns (output (S,1,H), hidden (1,1,H), semantics (S, semantic_n_hidden))
    """
    H = prep["embedding"].shape[1]
    tok = tokens[:, 0]                                  # robust to S == 1 (vs .squeeze())
    embedded = prep["embedding"][tok]                   # (S, H)   -- glue gather
    semantics = prep["semantic_embedding"][tok]         # (S, SEM) -- glue gather

    out2d, h_fin = gru_pallas(embedded.astype(jnp.float32),
                              hidden.reshape(1, H).astype(jnp.float32),
                              prep["wih_s"], prep["whh_s"],
                              prep["b_ih_s"], prep["b_hh_s"])
    return out2d[:, None, :], h_fin.reshape(1, 1, H), semantics


def encoder_rnn_reference(tokens, hidden, params):
    """Pure-JAX reference (lax.scan GRU) for correctness check."""
    H = params["w_ih"].shape[1]
    tok = tokens[:, 0]
    embedded = params["embedding"][tok]                 # (S, H)
    semantics = params["semantic_embedding"][tok]
    w_ih, w_hh = params["w_ih"], params["w_hh"]
    b_ih, b_hh = params["b_ih"], params["b_hh"]

    def step(h, x):
        gi = x @ w_ih.T + b_ih
        gh = h @ w_hh.T + b_hh
        i_r, i_z, i_n = gi[:H], gi[H:2 * H], gi[2 * H:]
        h_r, h_z, h_n = gh[:H], gh[H:2 * H], gh[2 * H:]
        r = jax.nn.sigmoid(i_r + h_r)
        z = jax.nn.sigmoid(i_z + h_z)
        n = jnp.tanh(i_n + r * h_n)
        h_new = (1.0 - z) * n + z * h
        return h_new, h_new

    h_last, outs = jax.lax.scan(step, hidden.reshape(H), embedded)
    return outs[:, None, :], h_last.reshape(1, 1, H), semantics


if __name__ == "__main__":
    # Small shapes consistent with the module's usage: per-token GRU encoder,
    # batch = 1, seq = 8, hidden = 32, vocab = 16, semantic_n_hidden = 120.
    V, H, SEM, S = 16, 32, 120, 8

    key = jax.random.PRNGKey(0)
    k = jax.random.split(key, 7)
    scale = 1.0 / jnp.sqrt(jnp.float32(H))
    params = {
        "embedding": jax.random.normal(k[0], (V, H), jnp.float32) * 0.1,
        "semantic_embedding": jax.random.normal(k[1], (V, SEM), jnp.float32) * 0.1,
        "w_ih": jax.random.uniform(k[2], (3 * H, H), jnp.float32, -scale, scale),
        "w_hh": jax.random.uniform(k[3], (3 * H, H), jnp.float32, -scale, scale),
        "b_ih": jax.random.uniform(k[4], (3 * H,), jnp.float32, -scale, scale),
        "b_hh": jax.random.uniform(k[5], (3 * H,), jnp.float32, -scale, scale),
    }
    tokens = jax.random.randint(k[6], (S, 1), 0, V, dtype=jnp.int32)
    hidden0 = jnp.zeros((1, 1, H), jnp.float32)   # EncoderRNN.init_hidden()

    prep = prepare_gru_params(params)             # one-time weight restack/pad
    out, h_fin, sem = encoder_rnn_forward(tokens, hidden0, prep)
    jax.block_until_ready((out, h_fin, sem))

    out_ref, h_ref, sem_ref = encoder_rnn_reference(tokens, hidden0, params)
    assert out.shape == (S, 1, H) and h_fin.shape == (1, 1, H) and sem.shape == (S, SEM)
    assert jnp.allclose(out, out_ref, atol=1e-3, rtol=1e-3)
    assert jnp.allclose(h_fin, h_ref, atol=1e-3, rtol=1e-3)
    assert jnp.allclose(sem, sem_ref)

    print("KERNEL_OK")
</pallas_src>

<mosaic_0001>
module attributes {stable_mosaic.version = 11 : i64} {
  func.func @gru_encoder_kernel(%arg0: memref<8x32xf32, #tpu.memory_space<vmem>>, %arg1: memref<1x32xf32, #tpu.memory_space<vmem>>, %arg2: memref<32x128xf32, #tpu.memory_space<vmem>>, %arg3: memref<32x128xf32, #tpu.memory_space<vmem>>, %arg4: memref<1x128xf32, #tpu.memory_space<vmem>>, %arg5: memref<1x128xf32, #tpu.memory_space<vmem>>, %arg6: memref<8x32xf32, #tpu.memory_space<vmem>>, %arg7: memref<1x32xf32, #tpu.memory_space<vmem>>) attributes {dimension_semantics = [], scalar_prefetch = 0 : i64, scratch_operands = 0 : i64, tpu.core_type = #tpu.core_type<tc>} {
    %c0 = arith.constant 0 : index
    %c0_0 = arith.constant 0 : index
    %0 = vector.load %arg0[%c0, %c0_0] : memref<8x32xf32, #tpu.memory_space<vmem>>, vector<8x32xf32>
    %c0_1 = arith.constant 0 : index
    %c0_2 = arith.constant 0 : index
    %1 = vector.load %arg2[%c0_1, %c0_2] : memref<32x128xf32, #tpu.memory_space<vmem>>, vector<32x128xf32>
    %cst = arith.constant dense<0.000000e+00> : vector<8x128xf32>
    %2 = tpu.matmul %0, %1, %cst {dimension_numbers = #tpu.dot_dimension_numbers<[1], [0], [0], [1], [0, 0, 1, 1], [], []>} : vector<8x32xf32>, vector<32x128xf32>, vector<8x128xf32> -> vector<8x128xf32>
    %c0_3 = arith.constant 0 : index
    %c0_4 = arith.constant 0 : index
    %3 = vector.load %arg4[%c0_3, %c0_4] : memref<1x128xf32, #tpu.memory_space<vmem>>, vector<1x128xf32>
    %4 = vector.broadcast %3 : vector<1x128xf32> to vector<8x128xf32>
    %5 = arith.addf %2, %4 : vector<8x128xf32>
    %c0_5 = arith.constant 0 : index
    %c0_6 = arith.constant 0 : index
    %6 = vector.load %arg3[%c0_5, %c0_6] : memref<32x128xf32, #tpu.memory_space<vmem>>, vector<32x128xf32>
    %c0_7 = arith.constant 0 : index
    %c0_8 = arith.constant 0 : index
    %7 = vector.load %arg5[%c0_7, %c0_8] : memref<1x128xf32, #tpu.memory_space<vmem>>, vector<1x128xf32>
    %c0_9 = arith.constant 0 : index
    %c0_10 = arith.constant 0 : index
    %8 = vector.load %arg1[%c0_9, %c0_10] : memref<1x32xf32, #tpu.memory_space<vmem>>, vector<1x32xf32>
    %cst_11 = arith.constant dense<0.000000e+00> : vector<1x128xf32>
    %9 = tpu.matmul %8, %6, %cst_11 {dimension_numbers = #tpu.dot_dimension_numbers<[1], [0], [0], [1], [0, 0, 1, 1], [], []>} : vector<1x32xf32>, vector<32x128xf32>, vector<1x128xf32> -> vector<1x128xf32>
    %10 = arith.addf %9, %7 : vector<1x128xf32>
    %11 = vector.extract_strided_slice %5 {offsets = [0, 0], sizes = [1, 128], strides = [1, 1]} : vector<8x128xf32> to vector<1x128xf32>
    %12 = vector.extract_strided_slice %11 {offsets = [0, 0], sizes = [1, 32], strides = [1, 1]} : vector<1x128xf32> to vector<1x32xf32>
    %13 = vector.extract_strided_slice %10 {offsets = [0, 0], sizes = [1, 32], strides = [1, 1]} : vector<1x128xf32> to vector<1x32xf32>
    %14 = arith.addf %12, %13 : vector<1x32xf32>
    %15 = arith.negf %14 : vector<1x32xf32>
    %16 = math.exp %15 : vector<1x32xf32>
    %cst_12 = arith.constant 1.000000e+00 : f32
    %17 = vector.broadcast %cst_12 : f32 to vector<1x32xf32>
    %18 = arith.addf %17, %16 : vector<1x32xf32>
    %19 = arith.divf %17, %18 : vector<1x32xf32>
    %20 = vector.extract_strided_slice %11 {offsets = [0, 32], sizes = [1, 32], strides = [1, 1]} : vector<1x128xf32> to vector<1x32xf32>
    %21 = vector.extract_strided_slice %10 {offsets = [0, 32], sizes = [1, 32], strides = [1, 1]} : vector<1x128xf32> to vector<1x32xf32>
    %22 = arith.addf %20, %21 : vector<1x32xf32>
    %23 = arith.negf %22 : vector<1x32xf32>
    %24 = math.exp %23 : vector<1x32xf32>
    %cst_13 = arith.constant 1.000000e+00 : f32
    %25 = vector.broadcast %cst_13 : f32 to vector<1x32xf32>
    %26 = arith.addf %25, %24 : vector<1x32xf32>
    %27 = arith.divf %25, %26 : vector<1x32xf32>
    %28 = vector.extract_strided_slice %11 {offsets = [0, 64], sizes = [1, 32], strides = [1, 1]} : vector<1x128xf32> to vector<1x32xf32>
    %29 = vector.extract_strided_slice %10 {offsets = [0, 64], sizes = [1, 32], strides = [1, 1]} : vector<1x128xf32> to vector<1x32xf32>
    %30 = arith.mulf %19, %29 : vector<1x32xf32>
    %31 = arith.addf %28, %30 : vector<1x32xf32>
    %32 = math.tanh %31 : vector<1x32xf32>
    %cst_14 = arith.constant 1.000000e+00 : f32
    %33 = vector.broadcast %cst_14 : f32 to vector<1x32xf32>
    %34 = arith.subf %33, %27 : vector<1x32xf32>
    %35 = arith.mulf %34, %32 : vector<1x32xf32>
    %36 = arith.mulf %27, %8 : vector<1x32xf32>
    %37 = arith.addf %35, %36 : vector<1x32xf32>
    %cst_15 = arith.constant dense<0.000000e+00> : vector<1x128xf32>
    %38 = tpu.matmul %37, %6, %cst_15 {dimension_numbers = #tpu.dot_dimension_numbers<[1], [0], [0], [1], [0, 0, 1, 1], [], []>} : vector<1x32xf32>, vector<32x128xf32>, vector<1x128xf32> -> vector<1x128xf32>
    %39 = arith.addf %38, %7 : vector<1x128xf32>
    %40 = vector.extract_strided_slice %5 {offsets = [1, 0], sizes = [1, 128], strides = [1, 1]} : vector<8x128xf32> to vector<1x128xf32>
    %41 = vector.extract_strided_slice %40 {offsets = [0, 0], sizes = [1, 32], strides = [1, 1]} : vector<1x128xf32> to vector<1x32xf32>
    %42 = vector.extract_strided_slice %39 {offsets = [0, 0], sizes = [1, 32], strides = [1, 1]} : vector<1x128xf32> to vector<1x32xf32>
    %43 = arith.addf %41, %42 : vector<1x32xf32>
    %44 = arith.negf %43 : vector<1x32xf32>
    %45 = math.exp %44 : vector<1x32xf32>
    %cst_16 = arith.constant 1.000000e+00 : f32
    %46 = vector.broadcast %cst_16 : f32 to vector<1x32xf32>
    %47 = arith.addf %46, %45 : vector<1x32xf32>
    %48 = arith.divf %46, %47 : vector<1x32xf32>
    %49 = vector.extract_strided_slice %40 {offsets = [0, 32], sizes = [1, 32], strides = [1, 1]} : vector<1x128xf32> to vector<1x32xf32>
    %50 = vector.extract_strided_slice %39 {offsets = [0, 32], sizes = [1, 32], strides = [1, 1]} : vector<1x128xf32> to vector<1x32xf32>
    %51 = arith.addf %49, %50 : vector<1x32xf32>
    %52 = arith.negf %51 : vector<1x32xf32>
    %53 = math.exp %52 : vector<1x32xf32>
    %cst_17 = arith.constant 1.000000e+00 : f32
    %54 = vector.broadcast %cst_17 : f32 to vector<1x32xf32>
    %55 = arith.addf %54, %53 : vector<1x32xf32>
    %56 = arith.divf %54, %55 : vector<1x32xf32>
    %57 = vector.extract_strided_slice %40 {offsets = [0, 64], sizes = [1, 32], strides = [1, 1]} : vector<1x128xf32> to vector<1x32xf32>
    %58 = vector.extract_strided_slice %39 {offsets = [0, 64], sizes = [1, 32], strides = [1, 1]} : vector<1x128xf32> to vector<1x32xf32>
    %59 = arith.mulf %48, %58 : vector<1x32xf32>
    %60 = arith.addf %57, %59 : vector<1x32xf32>
    %61 = math.tanh %60 : vector<1x32xf32>
    %cst_18 = arith.constant 1.000000e+00 : f32
    %62 = vector.broadcast %cst_18 : f32 to vector<1x32xf32>
    %63 = arith.subf %62, %56 : vector<1x32xf32>
    %64 = arith.mulf %63, %61 : vector<1x32xf32>
    %65 = arith.mulf %56, %37 : vector<1x32xf32>
    %66 = arith.addf %64, %65 : vector<1x32xf32>
    %cst_19 = arith.constant dense<0.000000e+00> : vector<1x128xf32>
    %67 = tpu.matmul %66, %6, %cst_19 {dimension_numbers = #tpu.dot_dimension_numbers<[1], [0], [0], [1], [0, 0, 1, 1], [], []>} : vector<1x32xf32>, vector<32x128xf32>, vector<1x128xf32> -> vector<1x128xf32>
    %68 = arith.addf %67, %7 : vector<1x128xf32>
    %69 = vector.extract_strided_slice %5 {offsets = [2, 0], sizes = [1, 128], strides = [1, 1]} : vector<8x128xf32> to vector<1x128xf32>
    %70 = vector.extract_strided_slice %69 {offsets = [0, 0], sizes = [1, 32], strides = [1, 1]} : vector<1x128xf32> to vector<1x32xf32>
    %71 = vector.extract_strided_slice %68 {offsets = [0, 0], sizes = [1, 32], strides = [1, 1]} : vector<1x128xf32> to vector<1x32xf32>
    %72 = arith.addf %70, %71 : vector<1x32xf32>
    %73 = arith.negf %72 : vector<1x32xf32>
    %74 = math.exp %73 : vector<1x32xf32>
    %cst_20 = arith.constant 1.000000e+00 : f32
    %75 = vector.broadcast %cst_20 : f32 to vector<1x32xf32>
    %76 = arith.addf %75, %74 : vector<1x32xf32>
    %77 = arith.divf %75, %76 : vector<1x32xf32>
    %78 = vector.extract_strided_slice %69 {offsets = [0, 32], sizes = [1, 32], strides = [1, 1]} : vector<1x128xf32> to vector<1x32xf32>
    %79 = vector.extract_strided_slice %68 {offsets = [0, 32], sizes = [1, 32], strides = [1, 1]} : vector<1x128xf32> to vector<1x32xf32>
    %80 = arith.addf %78, %79 : vector<1x32xf32>
    %81 = arith.negf %80 : vector<1x32xf32>
    %82 = math.exp %81 : vector<1x32xf32>
    %cst_21 = arith.constant 1.000000e+00 : f32
    %83 = vector.broadcast %cst_21 : f32 to vector<1x32xf32>
    %84 = arith.addf %83, %82 : vector<1x32xf32>
    %85 = arith.divf %83, %84 : vector<1x32xf32>
    %86 = vector.extract_strided_slice %69 {offsets = [0, 64], sizes = [1, 32], strides = [1, 1]} : vector<1x128xf32> to vector<1x32xf32>
    %87 = vector.extract_strided_slice %68 {offsets = [0, 64], sizes = [1, 32], strides = [1, 1]} : vector<1x128xf32> to vector<1x32xf32>
    %88 = arith.mulf %77, %87 : vector<1x32xf32>
    %89 = arith.addf %86, %88 : vector<1x32xf32>
    %90 = math.tanh %89 : vector<1x32xf32>
    %cst_22 = arith.constant 1.000000e+00 : f32
    %91 = vector.broadcast %cst_22 : f32 to vector<1x32xf32>
    %92 = arith.subf %91, %85 : vector<1x32xf32>
    %93 = arith.mulf %92, %90 : vector<1x32xf32>
    %94 = arith.mulf %85, %66 : vector<1x32xf32>
    %95 = arith.addf %93, %94 : vector<1x32xf32>
    %cst_23 = arith.constant dense<0.000000e+00> : vector<1x128xf32>
    %96 = tpu.matmul %95, %6, %cst_23 {dimension_numbers = #tpu.dot_dimension_numbers<[1], [0], [0], [1], [0, 0, 1, 1], [], []>} : vector<1x32xf32>, vector<32x128xf32>, vector<1x128xf32> -> vector<1x128xf32>
    %97 = arith.addf %96, %7 : vector<1x128xf32>
    %98 = vector.extract_strided_slice %5 {offsets = [3, 0], sizes = [1, 128], strides = [1, 1]} : vector<8x128xf32> to vector<1x128xf32>
    %99 = vector.extract_strided_slice %98 {offsets = [0, 0], sizes = [1, 32], strides = [1, 1]} : vector<1x128xf32> to vector<1x32xf32>
    %100 = vector.extract_strided_slice %97 {offsets = [0, 0], sizes = [1, 32], strides = [1, 1]} : vector<1x128xf32> to vector<1x32xf32>
    %101 = arith.addf %99, %100 : vector<1x32xf32>
    %102 = arith.negf %101 : vector<1x32xf32>
    %103 = math.exp %102 : vector<1x32xf32>
    %cst_24 = arith.constant 1.000000e+00 : f32
    %104 = vector.broadcast %cst_24 : f32 to vector<1x32xf32>
    %105 = arith.addf %104, %103 : vector<1x32xf32>
    %106 = arith.divf %104, %105 : vector<1x32xf32>
    %107 = vector.extract_strided_slice %98 {offsets = [0, 32], sizes = [1, 32], strides = [1, 1]} : vector<1x128xf32> to vector<1x32xf32>
    %108 = vector.extract_strided_slice %97 {offsets = [0, 32], sizes = [1, 32], strides = [1, 1]} : vector<1x128xf32> to vector<1x32xf32>
    %109 = arith.addf %107, %108 : vector<1x32xf32>
    %110 = arith.negf %109 : vector<1x32xf32>
    %111 = math.exp %110 : vector<1x32xf32>
    %cst_25 = arith.constant 1.000000e+00 : f32
    %112 = vector.broadcast %cst_25 : f32 to vector<1x32xf32>
    %113 = arith.addf %112, %111 : vector<1x32xf32>
    %114 = arith.divf %112, %113 : vector<1x32xf32>
    %115 = vector.extract_strided_slice %98 {offsets = [0, 64], sizes = [1, 32], strides = [1, 1]} : vector<1x128xf32> to vector<1x32xf32>
    %116 = vector.extract_strided_slice %97 {offsets = [0, 64], sizes = [1, 32], strides = [1, 1]} : vector<1x128xf32> to vector<1x32xf32>
    %117 = arith.mulf %106, %116 : vector<1x32xf32>
    %118 = arith.addf %115, %117 : vector<1x32xf32>
    %119 = math.tanh %118 : vector<1x32xf32>
    %cst_26 = arith.constant 1.000000e+00 : f32
    %120 = vector.broadcast %cst_26 : f32 to vector<1x32xf32>
    %121 = arith.subf %120, %114 : vector<1x32xf32>
    %122 = arith.mulf %121, %119 : vector<1x32xf32>
    %123 = arith.mulf %114, %95 : vector<1x32xf32>
    %124 = arith.addf %122, %123 : vector<1x32xf32>
    %cst_27 = arith.constant dense<0.000000e+00> : vector<1x128xf32>
    %125 = tpu.matmul %124, %6, %cst_27 {dimension_numbers = #tpu.dot_dimension_numbers<[1], [0], [0], [1], [0, 0, 1, 1], [], []>} : vector<1x32xf32>, vector<32x128xf32>, vector<1x128xf32> -> vector<1x128xf32>
    %126 = arith.addf %125, %7 : vector<1x128xf32>
    %127 = vector.extract_strided_slice %5 {offsets = [4, 0], sizes = [1, 128], strides = [1, 1]} : vector<8x128xf32> to vector<1x128xf32>
    %128 = vector.extract_strided_slice %127 {offsets = [0, 0], sizes = [1, 32], strides = [1, 1]} : vector<1x128xf32> to vector<1x32xf32>
    %129 = vector.extract_strided_slice %126 {offsets = [0, 0], sizes = [1, 32], strides = [1, 1]} : vector<1x128xf32> to vector<1x32xf32>
    %130 = arith.addf %128, %129 : vector<1x32xf32>
    %131 = arith.negf %130 : vector<1x32xf32>
    %132 = math.exp %131 : vector<1x32xf32>
    %cst_28 = arith.constant 1.000000e+00 : f32
    %133 = vector.broadcast %cst_28 : f32 to vector<1x32xf32>
    %134 = arith.addf %133, %132 : vector<1x32xf32>
    %135 = arith.divf %133, %134 : vector<1x32xf32>
    %136 = vector.extract_strided_slice %127 {offsets = [0, 32], sizes = [1, 32], strides = [1, 1]} : vector<1x128xf32> to vector<1x32xf32>
    %137 = vector.extract_strided_slice %126 {offsets = [0, 32], sizes = [1, 32], strides = [1, 1]} : vector<1x128xf32> to vector<1x32xf32>
    %138 = arith.addf %136, %137 : vector<1x32xf32>
    %139 = arith.negf %138 : vector<1x32xf32>
    %140 = math.exp %139 : vector<1x32xf32>
    %cst_29 = arith.constant 1.000000e+00 : f32
    %141 = vector.broadcast %cst_29 : f32 to vector<1x32xf32>
    %142 = arith.addf %141, %140 : vector<1x32xf32>
    %143 = arith.divf %141, %142 : vector<1x32xf32>
    %144 = vector.extract_strided_slice %127 {offsets = [0, 64], sizes = [1, 32], strides = [1, 1]} : vector<1x128xf32> to vector<1x32xf32>
    %145 = vector.extract_strided_slice %126 {offsets = [0, 64], sizes = [1, 32], strides = [1, 1]} : vector<1x128xf32> to vector<1x32xf32>
    %146 = arith.mulf %135, %145 : vector<1x32xf32>
    %147 = arith.addf %144, %146 : vector<1x32xf32>
    %148 = math.tanh %147 : vector<1x32xf32>
    %cst_30 = arith.constant 1.000000e+00 : f32
    %149 = vector.broadcast %cst_30 : f32 to vector<1x32xf32>
    %150 = arith.subf %149, %143 : vector<1x32xf32>
    %151 = arith.mulf %150, %148 : vector<1x32xf32>
    %152 = arith.mulf %143, %124 : vector<1x32xf32>
    %153 = arith.addf %151, %152 : vector<1x32xf32>
    %cst_31 = arith.constant dense<0.000000e+00> : vector<1x128xf32>
    %154 = tpu.matmul %153, %6, %cst_31 {dimension_numbers = #tpu.dot_dimension_numbers<[1], [0], [0], [1], [0, 0, 1, 1], [], []>} : vector<1x32xf32>, vector<32x128xf32>, vector<1x128xf32> -> vector<1x128xf32>
    %155 = arith.addf %154, %7 : vector<1x128xf32>
    %156 = vector.extract_strided_slice %5 {offsets = [5, 0], sizes = [1, 128], strides = [1, 1]} : vector<8x128xf32> to vector<1x128xf32>
    %157 = vector.extract_strided_slice %156 {offsets = [0, 0], sizes = [1, 32], strides = [1, 1]} : vector<1x128xf32> to vector<1x32xf32>
    %158 = vector.extract_strided_slice %155 {offsets = [0, 0], sizes = [1, 32], strides = [1, 1]} : vector<1x128xf32> to vector<1x32xf32>
    %159 = arith.addf %157, %158 : vector<1x32xf32>
    %160 = arith.negf %159 : vector<1x32xf32>
    %161 = math.exp %160 : vector<1x32xf32>
    %cst_32 = arith.constant 1.000000e+00 : f32
    %162 = vector.broadcast %cst_32 : f32 to vector<1x32xf32>
    %163 = arith.addf %162, %161 : vector<1x32xf32>
    %164 = arith.divf %162, %163 : vector<1x32xf32>
    %165 = vector.extract_strided_slice %156 {offsets = [0, 32], sizes = [1, 32], strides = [1, 1]} : vector<1x128xf32> to vector<1x32xf32>
    %166 = vector.extract_strided_slice %155 {offsets = [0, 32], sizes = [1, 32], strides = [1, 1]} : vector<1x128xf32> to vector<1x32xf32>
    %167 = arith.addf %165, %166 : vector<1x32xf32>
    %168 = arith.negf %167 : vector<1x32xf32>
    %169 = math.exp %168 : vector<1x32xf32>
    %cst_33 = arith.constant 1.000000e+00 : f32
    %170 = vector.broadcast %cst_33 : f32 to vector<1x32xf32>
    %171 = arith.addf %170, %169 : vector<1x32xf32>
    %172 = arith.divf %170, %171 : vector<1x32xf32>
    %173 = vector.extract_strided_slice %156 {offsets = [0, 64], sizes = [1, 32], strides = [1, 1]} : vector<1x128xf32> to vector<1x32xf32>
    %174 = vector.extract_strided_slice %155 {offsets = [0, 64], sizes = [1, 32], strides = [1, 1]} : vector<1x128xf32> to vector<1x32xf32>
    %175 = arith.mulf %164, %174 : vector<1x32xf32>
    %176 = arith.addf %173, %175 : vector<1x32xf32>
    %177 = math.tanh %176 : vector<1x32xf32>
    %cst_34 = arith.constant 1.000000e+00 : f32
    %178 = vector.broadcast %cst_34 : f32 to vector<1x32xf32>
    %179 = arith.subf %178, %172 : vector<1x32xf32>
    %180 = arith.mulf %179, %177 : vector<1x32xf32>
    %181 = arith.mulf %172, %153 : vector<1x32xf32>
    %182 = arith.addf %180, %181 : vector<1x32xf32>
    %cst_35 = arith.constant dense<0.000000e+00> : vector<1x128xf32>
    %183 = tpu.matmul %182, %6, %cst_35 {dimension_numbers = #tpu.dot_dimension_numbers<[1], [0], [0], [1], [0, 0, 1, 1], [], []>} : vector<1x32xf32>, vector<32x128xf32>, vector<1x128xf32> -> vector<1x128xf32>
    %184 = arith.addf %183, %7 : vector<1x128xf32>
    %185 = vector.extract_strided_slice %5 {offsets = [6, 0], sizes = [1, 128], strides = [1, 1]} : vector<8x128xf32> to vector<1x128xf32>
    %186 = vector.extract_strided_slice %185 {offsets = [0, 0], sizes = [1, 32], strides = [1, 1]} : vector<1x128xf32> to vector<1x32xf32>
    %187 = vector.extract_strided_slice %184 {offsets = [0, 0], sizes = [1, 32], strides = [1, 1]} : vector<1x128xf32> to vector<1x32xf32>
    %188 = arith.addf %186, %187 : vector<1x32xf32>
    %189 = arith.negf %188 : vector<1x32xf32>
    %190 = math.exp %189 : vector<1x32xf32>
    %cst_36 = arith.constant 1.000000e+00 : f32
    %191 = vector.broadcast %cst_36 : f32 to vector<1x32xf32>
    %192 = arith.addf %191, %190 : vector<1x32xf32>
    %193 = arith.divf %191, %192 : vector<1x32xf32>
    %194 = vector.extract_strided_slice %185 {offsets = [0, 32], sizes = [1, 32], strides = [1, 1]} : vector<1x128xf32> to vector<1x32xf32>
    %195 = vector.extract_strided_slice %184 {offsets = [0, 32], sizes = [1, 32], strides = [1, 1]} : vector<1x128xf32> to vector<1x32xf32>
    %196 = arith.addf %194, %195 : vector<1x32xf32>
    %197 = arith.negf %196 : vector<1x32xf32>
    %198 = math.exp %197 : vector<1x32xf32>
    %cst_37 = arith.constant 1.000000e+00 : f32
    %199 = vector.broadcast %cst_37 : f32 to vector<1x32xf32>
    %200 = arith.addf %199, %198 : vector<1x32xf32>
    %201 = arith.divf %199, %200 : vector<1x32xf32>
    %202 = vector.extract_strided_slice %185 {offsets = [0, 64], sizes = [1, 32], strides = [1, 1]} : vector<1x128xf32> to vector<1x32xf32>
    %203 = vector.extract_strided_slice %184 {offsets = [0, 64], sizes = [1, 32], strides = [1, 1]} : vector<1x128xf32> to vector<1x32xf32>
    %204 = arith.mulf %193, %203 : vector<1x32xf32>
    %205 = arith.addf %202, %204 : vector<1x32xf32>
    %206 = math.tanh %205 : vector<1x32xf32>
    %cst_38 = arith.constant 1.000000e+00 : f32
    %207 = vector.broadcast %cst_38 : f32 to vector<1x32xf32>
    %208 = arith.subf %207, %201 : vector<1x32xf32>
    %209 = arith.mulf %208, %206 : vector<1x32xf32>
    %210 = arith.mulf %201, %182 : vector<1x32xf32>
    %211 = arith.addf %209, %210 : vector<1x32xf32>
    %cst_39 = arith.constant dense<0.000000e+00> : vector<1x128xf32>
    %212 = tpu.matmul %211, %6, %cst_39 {dimension_numbers = #tpu.dot_dimension_numbers<[1], [0], [0], [1], [0, 0, 1, 1], [], []>} : vector<1x32xf32>, vector<32x128xf32>, vector<1x128xf32> -> vector<1x128xf32>
    %213 = arith.addf %212, %7 : vector<1x128xf32>
    %214 = vector.extract_strided_slice %5 {offsets = [7, 0], sizes = [1, 128], strides = [1, 1]} : vector<8x128xf32> to vector<1x128xf32>
    %215 = vector.extract_strided_slice %214 {offsets = [0, 0], sizes = [1, 32], strides = [1, 1]} : vector<1x128xf32> to vector<1x32xf32>
    %216 = vector.extract_strided_slice %213 {offsets = [0, 0], sizes = [1, 32], strides = [1, 1]} : vector<1x128xf32> to vector<1x32xf32>
    %217 = arith.addf %215, %216 : vector<1x32xf32>
    %218 = arith.negf %217 : vector<1x32xf32>
    %219 = math.exp %218 : vector<1x32xf32>
    %cst_40 = arith.constant 1.000000e+00 : f32
    %220 = vector.broadcast %cst_40 : f32 to vector<1x32xf32>
    %221 = arith.addf %220, %219 : vector<1x32xf32>
    %222 = arith.divf %220, %221 : vector<1x32xf32>
    %223 = vector.extract_strided_slice %214 {offsets = [0, 32], sizes = [1, 32], strides = [1, 1]} : vector<1x128xf32> to vector<1x32xf32>
    %224 = vector.extract_strided_slice %213 {offsets = [0, 32], sizes = [1, 32], strides = [1, 1]} : vector<1x128xf32> to vector<1x32xf32>
    %225 = arith.addf %223, %224 : vector<1x32xf32>
    %226 = arith.negf %225 : vector<1x32xf32>
    %227 = math.exp %226 : vector<1x32xf32>
    %cst_41 = arith.constant 1.000000e+00 : f32
    %228 = vector.broadcast %cst_41 : f32 to vector<1x32xf32>
    %229 = arith.addf %228, %227 : vector<1x32xf32>
    %230 = arith.divf %228, %229 : vector<1x32xf32>
    %231 = vector.extract_strided_slice %214 {offsets = [0, 64], sizes = [1, 32], strides = [1, 1]} : vector<1x128xf32> to vector<1x32xf32>
    %232 = vector.extract_strided_slice %213 {offsets = [0, 64], sizes = [1, 32], strides = [1, 1]} : vector<1x128xf32> to vector<1x32xf32>
    %233 = arith.mulf %222, %232 : vector<1x32xf32>
    %234 = arith.addf %231, %233 : vector<1x32xf32>
    %235 = math.tanh %234 : vector<1x32xf32>
    %cst_42 = arith.constant 1.000000e+00 : f32
    %236 = vector.broadcast %cst_42 : f32 to vector<1x32xf32>
    %237 = arith.subf %236, %230 : vector<1x32xf32>
    %238 = arith.mulf %237, %235 : vector<1x32xf32>
    %239 = arith.mulf %230, %211 : vector<1x32xf32>
    %240 = arith.addf %238, %239 : vector<1x32xf32>
    %241 = tpu.concatenate %37, %66, %95, %124, %153, %182, %211, %240 in 0 : vector<1x32xf32>, vector<1x32xf32>, vector<1x32xf32>, vector<1x32xf32>, vector<1x32xf32>, vector<1x32xf32>, vector<1x32xf32>, vector<1x32xf32> -> vector<8x32xf32>
    %c0_43 = arith.constant 0 : index
    %c0_44 = arith.constant 0 : index
    %242 = vector.load %arg6[%c0_43, %c0_44] : memref<8x32xf32, #tpu.memory_space<vmem>>, vector<8x32xf32>
    tpu.vector_store %arg6[%c0_43, %c0_44], %241 {strides = array<i32>} : memref<8x32xf32, #tpu.memory_space<vmem>>, vector<8x32xf32>,
    %c0_45 = arith.constant 0 : index
    %c0_46 = arith.constant 0 : index
    %243 = vector.load %arg7[%c0_45, %c0_46] : memref<1x32xf32, #tpu.memory_space<vmem>>, vector<1x32xf32>
    tpu.vector_store %arg7[%c0_45, %c0_46], %240 {strides = array<i32>} : memref<1x32xf32, #tpu.memory_space<vmem>>, vector<1x32xf32>,
    return
  }
}

</mosaic_0001>

<llo_original>
// kernel: tpu_custom_call.1
$region0: #{tpu_custom_call.1}
  #allocation0 [shape = 'u32[]', space=smem, size = 0x4, offset = 0x4, fixed_abs, tag = 'smem constant byte address 0x4 - core index']
  #allocation1 [shape = 'u32[72,128]{1,0:T(1,128)}', space=vmem, size = 0x9000, scoped, tag = 'internal scratch']
  %s0 = inlined_call_operand.hbm [shape: f32[8,32], index: 0, kind: input, shape index: {}]
  %s1 = inlined_call_operand.hbm [shape: f32[1,32], index: 1, kind: input, shape index: {}]
  %s2 = inlined_call_operand.hbm [shape: f32[32,128], index: 2, kind: input, shape index: {}]
  %s3 = inlined_call_operand.hbm [shape: f32[32,128], index: 3, kind: input, shape index: {}]
  %s4 = inlined_call_operand.vmem [shape: f32[1,128], index: 4, kind: input, shape index: {}]
  %s5 = inlined_call_operand.vmem [shape: f32[1,128], index: 5, kind: input, shape index: {}]
  %s6 = inlined_call_operand.hbm [shape: f32[8,32], index: 6, kind: output, shape index: {0}]
  %s7 = inlined_call_operand.hbm [shape: f32[1,32], index: 7, kind: output, shape index: {1}]
  %8 = xla_tuple %s6, %s7
  %s9 = sld [smem:[#allocation0]]
  $region58: #{tpu_custom_call.1} parent=0
    _
  %s11 = ssub.s32 1, %s9
  %s12 = scalar_select 0, %s11, %s9
  $region1: #{tpu_custom_call.1} parent=0
    #allocation2 [shape = 'u8[4096]{0}', space=vmem, size = 0x1000, scoped, tag = 'input window, operand 0, single buffered']
    #allocation3 [shape = 's32[1]{0}', space=sflag, size = 0x4, scoped, tag = 'scoped memory for tpu_custom_call.1']
    #allocation4 [shape = 's32[1]{0}', space=sflag, size = 0x4, scoped, tag = 'scoped memory for tpu_custom_call.1']
    #allocation5 [shape = 'u8[512]{0}', space=vmem, size = 0x400, scoped, tag = 'input window, operand 1, single buffered']
    #allocation6 [shape = 's32[1]{0}', space=sflag, size = 0x4, scoped, tag = 'scoped memory for tpu_custom_call.1']
    #allocation7 [shape = 'u8[16384]{0}', space=vmem, size = 0x4000, scoped, tag = 'input window, operand 2, single buffered']
    #allocation8 [shape = 'u8[16384]{0}', space=vmem, size = 0x4000, scoped, tag = 'input window, operand 3, single buffered']
    #allocation9 [shape = 's32[1]{0}', space=sflag, size = 0x4, scoped, tag = 'scoped memory for tpu_custom_call.1']
    #allocation10 [shape = 'u8[4096]{0}', space=vmem, size = 0x1000, scoped, tag = 'output window, operand 0, single buffered']
    #allocation11 [shape = 'u8[512]{0}', space=vmem, size = 0x400, scoped, tag = 'output window, operand 1, single buffered']
    #allocation12 [shape = 's32[1]{0}', space=sflag, size = 0x4, scoped, tag = 'scoped memory for tpu_custom_call.1']
    %13 = vsyncpa [#allocation3], 0
    %14 = vsyncpa [#allocation6], 0
    %15 = vsyncpa [#allocation9], 0
    %16 = vsyncpa [#allocation4], 0
    %17 = vsyncpa [#allocation12], 0
    // Predicated region
    $region2: #{tpu_custom_call.1} parent=1 // pred_check
      _
    $region3: #{tpu_custom_call.1} parent=1 // pred_check_branch
      %19 = sbr.rel (0) target = $region5
    $region4: #{tpu_custom_call.1} parent=1 // pred_region
      %21 = vsyncadd [#allocation3], 0
      %s23 = sshll.u32 %s0, 4
      %s24 = int_to_ptr.hbm [resolvable:$true] %s23
      %s25 = sshll.u32 [#allocation2], 4
      %s26 = int_to_ptr.vmem [resolvable:$true] %s25
      %28 = dma.hbm_to_vmem [thread:$0]  %s24, 128, %s26, [#allocation3]
    $region5: #{tpu_custom_call.1} parent=1 // pred_fallthru
      _
    // Predicated region
    $region6: #{tpu_custom_call.1} parent=1 // pred_check
      _
    $region7: #{tpu_custom_call.1} parent=1 // pred_check_branch
      %30 = sbr.rel (0) target = $region9
    $region8: #{tpu_custom_call.1} parent=1 // pred_region
      %32 = vsyncadd [#allocation6], 0
      %s34 = sshll.u32 %s1, 4
      %s35 = int_to_ptr.hbm [resolvable:$true] %s34
      %s36 = sshll.u32 [#allocation5], 4
      %s37 = int_to_ptr.vmem [resolvable:$true] %s36
      %39 = dma.hbm_to_vmem [thread:$0]  %s35, 16, %s37, [#allocation6]
    $region9: #{tpu_custom_call.1} parent=1 // pred_fallthru
      _
    // Predicated region
    $region10: #{tpu_custom_call.1} parent=1 // pred_check
      _
    $region11: #{tpu_custom_call.1} parent=1 // pred_check_branch
      %41 = sbr.rel (0) target = $region13
    $region12: #{tpu_custom_call.1} parent=1 // pred_region
      %43 = vsyncadd [#allocation6], 0
      %s44 = sshll.u32 %s2, 4
      %s45 = int_to_ptr.hbm [resolvable:$true] %s44
      %s46 = sshll.u32 [#allocation7], 4
      %s47 = int_to_ptr.vmem [resolvable:$true] %s46
      %52 = dma.hbm_to_vmem [thread:$0]  %s45, 512, %s47, [#allocation6], 128, 128, 8
    $region13: #{tpu_custom_call.1} parent=1 // pred_fallthru
      _
    // Predicated region
    $region14: #{tpu_custom_call.1} parent=1 // pred_check
      _
    $region15: #{tpu_custom_call.1} parent=1 // pred_check_branch
      %54 = sbr.rel (0) target = $region17
    $region16: #{tpu_custom_call.1} parent=1 // pred_region
      %56 = vsyncadd [#allocation9], 0
      %s57 = sshll.u32 %s3, 4
      %s58 = int_to_ptr.hbm [resolvable:$true] %s57
      %s59 = sshll.u32 [#allocation8], 4
      %s60 = int_to_ptr.vmem [resolvable:$true] %s59
      %65 = dma.hbm_to_vmem [thread:$0]  %s58, 512, %s60, [#allocation9], 128, 128, 8
    $region17: #{tpu_custom_call.1} parent=1 // pred_fallthru
      _
    // Predicated region
    $region18: #{tpu_custom_call.1} parent=1 // pred_check
      _
    $region19: #{tpu_custom_call.1} parent=1 // pred_check_branch
      %67 = sbr.rel (0) target = $region21
    $region20: #{tpu_custom_call.1} parent=1 // pred_region
      _
    $region21: #{tpu_custom_call.1} parent=1 // pred_fallthru
      _
    // Predicated region
    $region22: #{tpu_custom_call.1} parent=1 // pred_check
      _
    $region23: #{tpu_custom_call.1} parent=1 // pred_check_branch
      %69 = sbr.rel (0) target = $region25
    $region24: #{tpu_custom_call.1} parent=1 // pred_region
      _
    $region25: #{tpu_custom_call.1} parent=1 // pred_fallthru
      _
    // Predicated region
    $region26: #{tpu_custom_call.1} parent=1 // pred_check
      _
    $region27: #{tpu_custom_call.1} parent=1 // pred_check_branch
      %71 = sbr.rel (0) target = $region29
    $region28: #{tpu_custom_call.1} parent=1 // pred_region
      %73 = dma.done [#allocation3], 128
    $region29: #{tpu_custom_call.1} parent=1 // pred_fallthru
      _
    // Predicated region
    $region30: #{tpu_custom_call.1} parent=1 // pred_check
      _
    $region31: #{tpu_custom_call.1} parent=1 // pred_check_branch
      %75 = sbr.rel (0) target = $region33
    $region32: #{tpu_custom_call.1} parent=1 // pred_region
      %77 = dma.done [#allocation6], 16
    $region33: #{tpu_custom_call.1} parent=1 // pred_fallthru
      _
    // Predicated region
    $region34: #{tpu_custom_call.1} parent=1 // pred_check
      _
    $region35: #{tpu_custom_call.1} parent=1 // pred_check_branch
      %79 = sbr.rel (0) target = $region37
    $region36: #{tpu_custom_call.1} parent=1 // pred_region
      %81 = dma.done [#allocation6], 512
    $region37: #{tpu_custom_call.1} parent=1 // pred_fallthru
      _
    // Predicated region
    $region38: #{tpu_custom_call.1} parent=1 // pred_check
      _
    $region39: #{tpu_custom_call.1} parent=1 // pred_check_branch
      %83 = sbr.rel (0) target = $region41
    $region40: #{tpu_custom_call.1} parent=1 // pred_region
      %85 = dma.done [#allocation9], 512
    $region41: #{tpu_custom_call.1} parent=1 // pred_fallthru
      _
    %v86 = vld [vmem:[#allocation2] sm:$0xff]
    %v87 = vld [vmem:[#allocation7] sm:$0xff]
    %v88 = vld [vmem:[#allocation7 + $0x8] sm:$0xff]
    %v89 = vld [vmem:[#allocation7 + $0x10] sm:$0xff]
    %v90 = vld [vmem:[#allocation7 + $0x18] sm:$0xff]
    %v91 = vld [vmem:[%s4] sm:$0x1]
    %v93 = vperm.slane %v91, 0
    %vm95 = vcmask 261120
    %v97 = vsel %vm95, %v86, 0
    %99 = vmatpush.msra.mxu0 0.0
    %100 = vmatpush.msra.mxu0 0.0
    %101 = vmatpush.msra.mxu0 0.0
    %102 = vmatpush.msra.mxu0 0.0
    %103 = vmatpush.msra.mxu0 0.0
    %104 = vmatpush.msra.mxu0 0.0
    %105 = vmatpush.msra.mxu0 0.0
    %106 = vmatpush.msra.mxu0 0.0
    %107 = vmatpush.msra.mxu0 0.0
    %108 = vmatpush.msra.mxu0 0.0
    %109 = vmatpush.msra.mxu0 0.0
    %110 = vmatpush.msra.mxu0 0.0
    %111 = vmatpush.msra.mxu0 %v90
    %112 = vmatpush.msra.mxu0 %v89
    %113 = vmatpush.msra.mxu0 %v88
    %114 = vmatpush.msra.mxu0 %v87
    %115 = vmatmul.f32.gmra.mxu0 %v97
    %v116 = vpop.f32.mrf.mxu0
    %v117 = vadd.f32 %v93, %v116
    %118 = vdwg.mxu0
    %v119 = vld [vmem:[#allocation8] sm:$0xff]
    %v120 = vld [vmem:[#allocation8 + $0x8] sm:$0xff]
    %v121 = vld [vmem:[#allocation8 + $0x10] sm:$0xff]
    %v122 = vld [vmem:[#allocation8 + $0x18] sm:$0xff]
    %v123 = vld [vmem:[%s5] sm:$0x1]
    %v124 = vld [vmem:[#allocation5] sm:$0x1]
    %v126 = vsel %vm95, %v124, 0
    %128 = vmatpush.msra.mxu0 0.0
    %129 = vmatpush.msra.mxu0 0.0
    %130 = vmatpush.msra.mxu0 0.0
    %131 = vmatpush.msra.mxu0 0.0
    %132 = vmatpush.msra.mxu0 0.0
    %133 = vmatpush.msra.mxu0 0.0
    %134 = vmatpush.msra.mxu0 0.0
    %135 = vmatpush.msra.mxu0 0.0
    %136 = vmatpush.msra.mxu0 0.0
    %137 = vmatpush.msra.mxu0 0.0
    %138 = vmatpush.msra.mxu0 0.0
    %139 = vmatpush.msra.mxu0 0.0
    %140 = vmatpush.msra.mxu0 %v122
    %141 = vmatpush.msra.mxu0 %v121
    %142 = vmatpush.msra.mxu0 %v120
    %143 = vmatpush.msra.mxu0 %v119
    %144 = vmatmul.f32.gmra.mxu0 %v126
    %v145 = vpop.f32.mrf.mxu0
    %v146 = vadd.f32 %v123, %v145
    %147 = vdwg.mxu0
    %v148 = vadd.f32 %v117, %v146
    %v149 = vxor.u32 %v148, 2147483648
    %v150 = vmul.f32 %v149, 1.442695
    %v151 = vpow.pop %v150
    %v152 = vadd.f32 %v151, 1.0
    %v153 = vrcp.pop %v152
    %v154 = vmul.f32 %v152, %v153
    %v155 = vsub.f32 1.0, %v154
    %v156 = vmul.f32 %v153, %v155
    %v157 = vadd.f32 %v153, %v156
    %vm158 = vweird.f32 %v152
    %vm159 = vweird.f32 %v153
    %vm160 = vmor %vm158, %vm159
    %v161 = vsel %vm160, %v153, %v157
    %v162 = vand.u32 2147483647, %v152
    %vm163 = vcmp.eq.f32.partialorder %v162, 8.507059e+37
    %v164 = vand.u32 %v152, 2147483648
    %v165 = vor.u32 1.1754944e-38, %v164
    %v166 = vsel %vm163, %v165, %v161
    %v167 = vmul.f32 1.0, %v166
    %169 = vrot.lane.b32.xlu0 %v146, 64
    %v170 = vpop.permute.xlu0 %169
    %v172 = vmul.f32 %v167, %v170
    %174 = vrot.lane.b32.xlu0 %v172, 64
    %v175 = vpop.permute.xlu0 %174
    %v177 = vadd.f32 %v117, %v175
    %v178 = vtanh.pop %v177
    %v179 = vsub.f32 1.0, %v167
    %181 = vrot.lane.b32.xlu0 %v178, 96
    %v182 = vpop.permute.xlu0 %181
    %v184 = vmul.f32 %v179, %v182
    %v185 = vperm.slane %v124, 0
    %186 = vrot.lane.b32.xlu0 %v185, 32
    %v187 = vpop.permute.xlu0 %186
    %v189 = vmul.f32 %v167, %v187
    %v190 = vadd.f32 %v184, %v189
    %192 = vrot.lane.b32.xlu0 %v190, 96
    %v193 = vpop.permute.xlu0 %192
    %v194 = vsel %vm95, %v193, 0
    %196 = vmatpush.msra.mxu0 0.0
    %197 = vmatpush.msra.mxu0 0.0
    %198 = vmatpush.msra.mxu0 0.0
    %199 = vmatpush.msra.mxu0 0.0
    %200 = vmatpush.msra.mxu0 0.0
    %201 = vmatpush.msra.mxu0 0.0
    %202 = vmatpush.msra.mxu0 0.0
    %203 = vmatpush.msra.mxu0 0.0
    %204 = vmatpush.msra.mxu0 0.0
    %205 = vmatpush.msra.mxu0 0.0
    %206 = vmatpush.msra.mxu0 0.0
    %207 = vmatpush.msra.mxu0 0.0
    %208 = vmatpush.msra.mxu0 %v122
    %209 = vmatpush.msra.mxu0 %v121
    %210 = vmatpush.msra.mxu0 %v120
    %211 = vmatpush.msra.mxu0 %v119
    %212 = vmatmul.f32.gmra.mxu0 %v194
    %v213 = vpop.f32.mrf.mxu0
    %v214 = vadd.f32 %v123, %v213
    %215 = vdwg.mxu0
    %v217 = vrot.slane %v214, 7
    %v219 = vadd.f32 %v117, %v217
    %v220 = vxor.u32 %v219, 2147483648
    %v221 = vmul.f32 %v220, 1.442695
    %v222 = vpow.pop %v221
    %v223 = vadd.f32 %v222, 1.0
    %v224 = vrcp.pop %v223
    %v225 = vmul.f32 %v223, %v224
    %v226 = vsub.f32 1.0, %v225
    %v227 = vmul.f32 %v224, %v226
    %v228 = vadd.f32 %v224, %v227
    %vm229 = vweird.f32 %v223
    %vm230 = vweird.f32 %v224
    %vm231 = vmor %vm229, %vm230
    %v232 = vsel %vm231, %v224, %v228
    %v233 = vand.u32 2147483647, %v223
    %vm234 = vcmp.eq.f32.partialorder %v233, 8.507059e+37
    %v235 = vand.u32 %v223, 2147483648
    %v236 = vor.u32 1.1754944e-38, %v235
    %v237 = vsel %vm234, %v236, %v232
    %v238 = vmul.f32 1.0, %v237
    %239 = vrot.lane.b32.xlu0 %v217, 64
    %v240 = vpop.permute.xlu0 %239
    %v242 = vmul.f32 %v238, %v240
    %244 = vrot.lane.b32.xlu0 %v242, 64
    %v245 = vpop.permute.xlu0 %244
    %v247 = vadd.f32 %v117, %v245
    %v248 = vtanh.pop %v247
    %v249 = vsub.f32 1.0, %v238
    %251 = vrot.lane.b32.xlu0 %v248, 96
    %v252 = vpop.permute.xlu0 %251
    %v254 = vmul.f32 %v249, %v252
    %v255 = vrot.slane %v190, 7
    %v257 = vmul.f32 %v238, %v255
    %v258 = vadd.f32 %v254, %v257
    %v260 = vrot.slane %v258, 1
    %261 = vrot.lane.b32.xlu0 %v260, 96
    %v262 = vpop.permute.xlu0 %261
    %v263 = vsel %vm95, %v262, 0
    %265 = vmatpush.msra.mxu0 0.0
    %266 = vmatpush.msra.mxu0 0.0
    %267 = vmatpush.msra.mxu0 0.0
    %268 = vmatpush.msra.mxu0 0.0
    %269 = vmatpush.msra.mxu0 0.0
    %270 = vmatpush.msra.mxu0 0.0
    %271 = vmatpush.msra.mxu0 0.0
    %272 = vmatpush.msra.mxu0 0.0
    %273 = vmatpush.msra.mxu0 0.0
    %274 = vmatpush.msra.mxu0 0.0
    %275 = vmatpush.msra.mxu0 0.0
    %276 = vmatpush.msra.mxu0 0.0
    %277 = vmatpush.msra.mxu0 %v122
    %278 = vmatpush.msra.mxu0 %v121
    %279 = vmatpush.msra.mxu0 %v120
    %280 = vmatpush.msra.mxu0 %v119
    %281 = vmatmul.f32.gmra.mxu0 %v263
    %v282 = vpop.f32.mrf.mxu0
    %v283 = vadd.f32 %v123, %v282
    %284 = vdwg.mxu0
    %v286 = vrot.slane %v283, 6
    %v288 = vadd.f32 %v117, %v286
    %v289 = vxor.u32 %v288, 2147483648
    %v290 = vmul.f32 %v289, 1.442695
    %v291 = vpow.pop %v290
    %v292 = vadd.f32 %v291, 1.0
    %v293 = vrcp.pop %v292
    %v294 = vmul.f32 %v292, %v293
    %v295 = vsub.f32 1.0, %v294
    %v296 = vmul.f32 %v293, %v295
    %v297 = vadd.f32 %v293, %v296
    %vm298 = vweird.f32 %v292
    %vm299 = vweird.f32 %v293
    %vm300 = vmor %vm298, %vm299
    %v301 = vsel %vm300, %v293, %v297
    %v302 = vand.u32 2147483647, %v292
    %vm303 = vcmp.eq.f32.partialorder %v302, 8.507059e+37
    %v304 = vand.u32 %v292, 2147483648
    %v305 = vor.u32 1.1754944e-38, %v304
    %v306 = vsel %vm303, %v305, %v301
    %v307 = vmul.f32 1.0, %v306
    %308 = vrot.lane.b32.xlu0 %v286, 64
    %v309 = vpop.permute.xlu0 %308
    %v311 = vmul.f32 %v307, %v309
    %313 = vrot.lane.b32.xlu0 %v311, 64
    %v314 = vpop.permute.xlu0 %313
    %v316 = vadd.f32 %v117, %v314
    %v317 = vtanh.pop %v316
    %v318 = vsub.f32 1.0, %v307
    %320 = vrot.lane.b32.xlu0 %v317, 96
    %v321 = vpop.permute.xlu0 %320
    %v323 = vmul.f32 %v318, %v321
    %v324 = vrot.slane %v258, 7
    %v326 = vmul.f32 %v307, %v324
    %v327 = vadd.f32 %v323, %v326
    %v329 = vrot.slane %v327, 2
    %330 = vrot.lane.b32.xlu0 %v329, 96
    %v331 = vpop.permute.xlu0 %330
    %v332 = vsel %vm95, %v331, 0
    %334 = vmatpush.msra.mxu0 0.0
    %335 = vmatpush.msra.mxu0 0.0
    %336 = vmatpush.msra.mxu0 0.0
    %337 = vmatpush.msra.mxu0 0.0
    %338 = vmatpush.msra.mxu0 0.0
    %339 = vmatpush.msra.mxu0 0.0
    %340 = vmatpush.msra.mxu0 0.0
    %341 = vmatpush.msra.mxu0 0.0
    %342 = vmatpush.msra.mxu0 0.0
    %343 = vmatpush.msra.mxu0 0.0
    %344 = vmatpush.msra.mxu0 0.0
    %345 = vmatpush.msra.mxu0 0.0
    %346 = vmatpush.msra.mxu0 %v122
    %347 = vmatpush.msra.mxu0 %v121
    %348 = vmatpush.msra.mxu0 %v120
    %349 = vmatpush.msra.mxu0 %v119
    %350 = vmatmul.f32.gmra.mxu0 %v332
    %v351 = vpop.f32.mrf.mxu0
    %v352 = vadd.f32 %v123, %v351
    %353 = vdwg.mxu0
    %v355 = vrot.slane %v352, 5
    %v357 = vadd.f32 %v117, %v355
    %v358 = vxor.u32 %v357, 2147483648
    %v359 = vmul.f32 %v358, 1.442695
    %v360 = vpow.pop %v359
    %v361 = vadd.f32 %v360, 1.0
    %v362 = vrcp.pop %v361
    %v363 = vmul.f32 %v361, %v362
    %v364 = vsub.f32 1.0, %v363
    %v365 = vmul.f32 %v362, %v364
    %v366 = vadd.f32 %v362, %v365
    %vm367 = vweird.f32 %v361
    %vm368 = vweird.f32 %v362
    %vm369 = vmor %vm367, %vm368
    %v370 = vsel %vm369, %v362, %v366
    %v371 = vand.u32 2147483647, %v361
    %vm372 = vcmp.eq.f32.partialorder %v371, 8.507059e+37
    %v373 = vand.u32 %v361, 2147483648
    %v374 = vor.u32 1.1754944e-38, %v373
    %v375 = vsel %vm372, %v374, %v370
    %v376 = vmul.f32 1.0, %v375
    %377 = vrot.lane.b32.xlu0 %v355, 64
    %v378 = vpop.permute.xlu0 %377
    %v380 = vmul.f32 %v376, %v378
    %382 = vrot.lane.b32.xlu0 %v380, 64
    %v383 = vpop.permute.xlu0 %382
    %v385 = vadd.f32 %v117, %v383
    %v386 = vtanh.pop %v385
    %v387 = vsub.f32 1.0, %v376
    %389 = vrot.lane.b32.xlu0 %v386, 96
    %v390 = vpop.permute.xlu0 %389
    %v392 = vmul.f32 %v387, %v390
    %v393 = vrot.slane %v327, 7
    %v395 = vmul.f32 %v376, %v393
    %v396 = vadd.f32 %v392, %v395
    %v398 = vrot.slane %v396, 3
    %399 = vrot.lane.b32.xlu0 %v398, 96
    %v400 = vpop.permute.xlu0 %399
    %v401 = vsel %vm95, %v400, 0
    %403 = vmatpush.msra.mxu0 0.0
    %404 = vmatpush.msra.mxu0 0.0
    %405 = vmatpush.msra.mxu0 0.0
    %406 = vmatpush.msra.mxu0 0.0
    %407 = vmatpush.msra.mxu0 0.0
    %408 = vmatpush.msra.mxu0 0.0
    %409 = vmatpush.msra.mxu0 0.0
    %410 = vmatpush.msra.mxu0 0.0
    %411 = vmatpush.msra.mxu0 0.0
    %412 = vmatpush.msra.mxu0 0.0
    %413 = vmatpush.msra.mxu0 0.0
    %414 = vmatpush.msra.mxu0 0.0
    %415 = vmatpush.msra.mxu0 %v122
    %416 = vmatpush.msra.mxu0 %v121
    %417 = vmatpush.msra.mxu0 %v120
    %418 = vmatpush.msra.mxu0 %v119
    %419 = vmatmul.f32.gmra.mxu0 %v401
    %v420 = vpop.f32.mrf.mxu0
    %v421 = vadd.f32 %v123, %v420
    %422 = vdwg.mxu0
    %v424 = vrot.slane %v421, 4
    %v426 = vadd.f32 %v117, %v424
    %v427 = vxor.u32 %v426, 2147483648
    %v428 = vmul.f32 %v427, 1.442695
    %v429 = vpow.pop %v428
    %v430 = vadd.f32 %v429, 1.0
    %v431 = vrcp.pop %v430
    %v432 = vmul.f32 %v430, %v431
    %v433 = vsub.f32 1.0, %v432
    %v434 = vmul.f32 %v431, %v433
    %v435 = vadd.f32 %v431, %v434
    %vm436 = vweird.f32 %v430
    %vm437 = vweird.f32 %v431
    %vm438 = vmor %vm436, %vm437
    %v439 = vsel %vm438, %v431, %v435
    %v440 = vand.u32 2147483647, %v430
    %vm441 = vcmp.eq.f32.partialorder %v440, 8.507059e+37
    %v442 = vand.u32 %v430, 2147483648
    %v443 = vor.u32 1.1754944e-38, %v442
    %v444 = vsel %vm441, %v443, %v439
    %v445 = vmul.f32 1.0, %v444
    %446 = vrot.lane.b32.xlu0 %v424, 64
    %v447 = vpop.permute.xlu0 %446
    %v449 = vmul.f32 %v445, %v447
    %451 = vrot.lane.b32.xlu0 %v449, 64
    %v452 = vpop.permute.xlu0 %451
    %v454 = vadd.f32 %v117, %v452
    %v455 = vtanh.pop %v454
    %v456 = vsub.f32 1.0, %v445
    %458 = vrot.lane.b32.xlu0 %v455, 96
    %v459 = vpop.permute.xlu0 %458
    %v461 = vmul.f32 %v456, %v459
    %v462 = vrot.slane %v396, 7
    %v464 = vmul.f32 %v445, %v462
    %v465 = vadd.f32 %v461, %v464
    %v467 = vrot.slane %v465, 4
    %468 = vrot.lane.b32.xlu0 %v467, 96
    %v469 = vpop.permute.xlu0 %468
    %v470 = vsel %vm95, %v469, 0
    %472 = vmatpush.msra.mxu0 0.0
    %473 = vmatpush.msra.mxu0 0.0
    %474 = vmatpush.msra.mxu0 0.0
    %475 = vmatpush.msra.mxu0 0.0
    %476 = vmatpush.msra.mxu0 0.0
    %477 = vmatpush.msra.mxu0 0.0
    %478 = vmatpush.msra.mxu0 0.0
    %479 = vmatpush.msra.mxu0 0.0
    %480 = vmatpush.msra.mxu0 0.0
    %481 = vmatpush.msra.mxu0 0.0
    %482 = vmatpush.msra.mxu0 0.0
    %483 = vmatpush.msra.mxu0 0.0
    %484 = vmatpush.msra.mxu0 %v122
    %485 = vmatpush.msra.mxu0 %v121
    %486 = vmatpush.msra.mxu0 %v120
    %487 = vmatpush.msra.mxu0 %v119
    %488 = vmatmul.f32.gmra.mxu0 %v470
    %v489 = vpop.f32.mrf.mxu0
    %v490 = vadd.f32 %v123, %v489
    %491 = vdwg.mxu0
    %v493 = vrot.slane %v490, 3
    %v495 = vadd.f32 %v117, %v493
    %v496 = vxor.u32 %v495, 2147483648
    %v497 = vmul.f32 %v496, 1.442695
    %v498 = vpow.pop %v497
    %v499 = vadd.f32 %v498, 1.0
    %v500 = vrcp.pop %v499
    %v501 = vmul.f32 %v499, %v500
    %v502 = vsub.f32 1.0, %v501
    %v503 = vmul.f32 %v500, %v502
    %v504 = vadd.f32 %v500, %v503
    %vm505 = vweird.f32 %v499
    %vm506 = vweird.f32 %v500
    %vm507 = vmor %vm505, %vm506
    %v508 = vsel %vm507, %v500, %v504
    %v509 = vand.u32 2147483647, %v499
    %vm510 = vcmp.eq.f32.partialorder %v509, 8.507059e+37
    %v511 = vand.u32 %v499, 2147483648
    %v512 = vor.u32 1.1754944e-38, %v511
    %v513 = vsel %vm510, %v512, %v508
    %v514 = vmul.f32 1.0, %v513
    %515 = vrot.lane.b32.xlu0 %v493, 64
    %v516 = vpop.permute.xlu0 %515
    %v518 = vmul.f32 %v514, %v516
    %520 = vrot.lane.b32.xlu0 %v518, 64
    %v521 = vpop.permute.xlu0 %520
    %v523 = vadd.f32 %v117, %v521
    %v524 = vtanh.pop %v523
    %v525 = vsub.f32 1.0, %v514
    %527 = vrot.lane.b32.xlu0 %v524, 96
    %v528 = vpop.permute.xlu0 %527
    %v530 = vmul.f32 %v525, %v528
    %v531 = vrot.slane %v465, 7
    %v533 = vmul.f32 %v514, %v531
    %v534 = vadd.f32 %v530, %v533
    %v536 = vrot.slane %v534, 5
    %537 = vrot.lane.b32.xlu0 %v536, 96
    %v538 = vpop.permute.xlu0 %537
    %v539 = vsel %vm95, %v538, 0
    %541 = vmatpush.msra.mxu0 0.0
    %542 = vmatpush.msra.mxu0 0.0
    %543 = vmatpush.msra.mxu0 0.0
    %544 = vmatpush.msra.mxu0 0.0
    %545 = vmatpush.msra.mxu0 0.0
    %546 = vmatpush.msra.mxu0 0.0
    %547 = vmatpush.msra.mxu0 0.0
    %548 = vmatpush.msra.mxu0 0.0
    %549 = vmatpush.msra.mxu0 0.0
    %550 = vmatpush.msra.mxu0 0.0
    %551 = vmatpush.msra.mxu0 0.0
    %552 = vmatpush.msra.mxu0 0.0
    %553 = vmatpush.msra.mxu0 %v122
    %554 = vmatpush.msra.mxu0 %v121
    %555 = vmatpush.msra.mxu0 %v120
    %556 = vmatpush.msra.mxu0 %v119
    %557 = vmatmul.f32.gmra.mxu0 %v539
    %v558 = vpop.f32.mrf.mxu0
    %v559 = vadd.f32 %v123, %v558
    %560 = vdwg.mxu0
    %v562 = vrot.slane %v559, 2
    %v564 = vadd.f32 %v117, %v562
    %v565 = vxor.u32 %v564, 2147483648
    %v566 = vmul.f32 %v565, 1.442695
    %v567 = vpow.pop %v566
    %v568 = vadd.f32 %v567, 1.0
    %v569 = vrcp.pop %v568
    %v570 = vmul.f32 %v568, %v569
    %v571 = vsub.f32 1.0, %v570
    %v572 = vmul.f32 %v569, %v571
    %v573 = vadd.f32 %v569, %v572
    %vm574 = vweird.f32 %v568
    %vm575 = vweird.f32 %v569
    %vm576 = vmor %vm574, %vm575
    %v577 = vsel %vm576, %v569, %v573
    %v578 = vand.u32 2147483647, %v568
    %vm579 = vcmp.eq.f32.partialorder %v578, 8.507059e+37
    %v580 = vand.u32 %v568, 2147483648
    %v581 = vor.u32 1.1754944e-38, %v580
    %v582 = vsel %vm579, %v581, %v577
    %v583 = vmul.f32 1.0, %v582
    %584 = vrot.lane.b32.xlu0 %v562, 64
    %v585 = vpop.permute.xlu0 %584
    %v587 = vmul.f32 %v583, %v585
    %589 = vrot.lane.b32.xlu0 %v587, 64
    %v590 = vpop.permute.xlu0 %589
    %v592 = vadd.f32 %v117, %v590
    %v593 = vtanh.pop %v592
    %v594 = vsub.f32 1.0, %v583
    %596 = vrot.lane.b32.xlu0 %v593, 96
    %v597 = vpop.permute.xlu0 %596
    %v599 = vmul.f32 %v594, %v597
    %v600 = vrot.slane %v534, 7
    %v602 = vmul.f32 %v583, %v600
    %v603 = vadd.f32 %v599, %v602
    %v605 = vrot.slane %v603, 6
    %606 = vrot.lane.b32.xlu0 %v605, 96
    %v607 = vpop.permute.xlu0 %606
    %v608 = vsel %vm95, %v607, 0
    %610 = vmatpush.msra.mxu0 0.0
    %611 = vmatpush.msra.mxu0 0.0
    %612 = vmatpush.msra.mxu0 0.0
    %613 = vmatpush.msra.mxu0 0.0
    %614 = vmatpush.msra.mxu0 0.0
    %615 = vmatpush.msra.mxu0 0.0
    %616 = vmatpush.msra.mxu0 0.0
    %617 = vmatpush.msra.mxu0 0.0
    %618 = vmatpush.msra.mxu0 0.0
    %619 = vmatpush.msra.mxu0 0.0
    %620 = vmatpush.msra.mxu0 0.0
    %621 = vmatpush.msra.mxu0 0.0
    %622 = vmatpush.msra.mxu0 %v122
    %623 = vmatpush.msra.mxu0 %v121
    %624 = vmatpush.msra.mxu0 %v120
    %625 = vmatpush.msra.mxu0 %v119
    %626 = vmatmul.f32.gmra.mxu0 %v608
    %v627 = vpop.f32.mrf.mxu0
    %v628 = vadd.f32 %v123, %v627
    %629 = vdwg.mxu0
    %v631 = vrot.slane %v628, 1
    %v633 = vadd.f32 %v117, %v631
    %v634 = vxor.u32 %v633, 2147483648
    %v635 = vmul.f32 %v634, 1.442695
    %v636 = vpow.pop %v635
    %v637 = vadd.f32 %v636, 1.0
    %v638 = vrcp.pop %v637
    %v639 = vmul.f32 %v637, %v638
    %v640 = vsub.f32 1.0, %v639
    %v641 = vmul.f32 %v638, %v640
    %v642 = vadd.f32 %v638, %v641
    %vm643 = vweird.f32 %v637
    %vm644 = vweird.f32 %v638
    %vm645 = vmor %vm643, %vm644
    %v646 = vsel %vm645, %v638, %v642
    %v647 = vand.u32 2147483647, %v637
    %vm648 = vcmp.eq.f32.partialorder %v647, 8.507059e+37
    %v649 = vand.u32 %v637, 2147483648
    %v650 = vor.u32 1.1754944e-38, %v649
    %v651 = vsel %vm648, %v650, %v646
    %v652 = vmul.f32 1.0, %v651
    %653 = vrot.lane.b32.xlu0 %v631, 64
    %v654 = vpop.permute.xlu0 %653
    %v656 = vmul.f32 %v652, %v654
    %658 = vrot.lane.b32.xlu0 %v656, 64
    %v659 = vpop.permute.xlu0 %658
    %v661 = vadd.f32 %v117, %v659
    %v662 = vtanh.pop %v661
    %v663 = vsub.f32 1.0, %v652
    %665 = vrot.lane.b32.xlu0 %v662, 96
    %v666 = vpop.permute.xlu0 %665
    %v668 = vmul.f32 %v663, %v666
    %v669 = vrot.slane %v603, 7
    %v671 = vmul.f32 %v652, %v669
    %v672 = vadd.f32 %v668, %v671
    %vm673 = vcmask 1040384
    %v674 = vsel %vm673, %v190, %v258
    %vm675 = vcmask 1041408
    %v676 = vsel %vm675, %v674, %v327
    %vm677 = vcmask 1042432
    %v678 = vsel %vm677, %v676, %v396
    %vm679 = vcmask 1043456
    %v680 = vsel %vm679, %v678, %v465
    %vm681 = vcmask 1044480
    %v682 = vsel %vm681, %v680, %v534
    %vm683 = vcmask 1045504
    %v684 = vsel %vm683, %v682, %v603
    %vm685 = vcmask 1046528
    %v686 = vsel %vm685, %v684, %v672
    %688 = vrot.lane.b32.xlu0 %v686, 96
    %v689 = vpop.permute.xlu0 %688
    %691 = vst.msk [vmem:[#allocation10] sm:$0xff] %vm95, %v689
    %693 = vrot.lane.b32.xlu0 %v672, 96
    %v694 = vpop.permute.xlu0 %693
    %vm696 = vcmask 261127
    %697 = vst.msk [vmem:[#allocation11 - $0x7] sm:$0x80] %vm696, %v694
    // Predicated region
    $region42: #{tpu_custom_call.1} parent=1 // pred_check
      _
    $region43: #{tpu_custom_call.1} parent=1 // pred_check_branch
      %699 = sbr.rel (0) target = $region45
    $region44: #{tpu_custom_call.1} parent=1 // pred_region
      %701 = vsyncadd [#allocation4], 0
      %s703 = sshll.u32 [#allocation10], 4
      %s704 = int_to_ptr.vmem [resolvable:$true] %s703
      %s705 = sshll.u32 %s6, 4
      %s706 = int_to_ptr.hbm [resolvable:$true] %s705
      %708 = dma.vmem_to_hbm [thread:$0]  %s704, 128, %s706, [#allocation4]
    $region45: #{tpu_custom_call.1} parent=1 // pred_fallthru
      _
    // Predicated region
    $region46: #{tpu_custom_call.1} parent=1 // pred_check
      _
    $region47: #{tpu_custom_call.1} parent=1 // pred_check_branch
      %710 = sbr.rel (0) target = $region49
    $region48: #{tpu_custom_call.1} parent=1 // pred_region
      %712 = vsyncadd [#allocation12], 0
      %s714 = sshll.u32 [#allocation11], 4
      %s715 = int_to_ptr.vmem [resolvable:$true] %s714
      %s716 = sshll.u32 %s7, 4
      %s717 = int_to_ptr.hbm [resolvable:$true] %s716
      %719 = dma.vmem_to_hbm [thread:$0]  %s715, 16, %s717, [#allocation12]
    $region49: #{tpu_custom_call.1} parent=1 // pred_fallthru
      _
    // Predicated region
    $region50: #{tpu_custom_call.1} parent=1 // pred_check
      _
    $region51: #{tpu_custom_call.1} parent=1 // pred_check_branch
      %721 = sbr.rel (0) target = $region53
    $region52: #{tpu_custom_call.1} parent=1 // pred_region
      %723 = dma.done [#allocation4], 128
    $region53: #{tpu_custom_call.1} parent=1 // pred_fallthru
      _
    // Predicated region
    $region54: #{tpu_custom_call.1} parent=1 // pred_check
      _
    $region55: #{tpu_custom_call.1} parent=1 // pred_check_branch
      %725 = sbr.rel (0) target = $region57
    $region56: #{tpu_custom_call.1} parent=1 // pred_region
      %727 = dma.done [#allocation12], 16
    $region57: #{tpu_custom_call.1} parent=1 // pred_fallthru
      _
    %728 = vsyncpa [#allocation3], 1
    %729 = vsyncpa [#allocation6], 1
    %730 = vsyncpa [#allocation9], 1
    %731 = vsyncpa [#allocation4], 1
    %732 = vsyncpa [#allocation12], 1

</llo_original>
